<compile_context>
chip_gen: v7x
topology: tpu7x:2x2x1
jax: 0.10.0
libtpu: 0.0.40
codegen_flags: <defaults>
</compile_context>

<pallas_src>
import functools

import jax
import jax.numpy as jnp
from jax.experimental import pallas as pl
from jax.experimental.pallas import tpu as pltpu


def _mlp_t(xT, w1, b1, w2, b2, w3, b3):
    """3-layer MLP in feature-major layout: activations are (features, atoms).

    Matmul operands are bf16 (accumulate f32 on the MXU); dropouts are identity.
    """
    h1 = jnp.dot(w1, xT, preferred_element_type=jnp.float32) + b1
    h1 = jnp.maximum(h1, 0.1 * h1)                         # LeakyReLU(0.1)
    h2 = jnp.dot(w2, h1.astype(jnp.bfloat16),
                 preferred_element_type=jnp.float32) + b2
    h2 = jnp.maximum(h2, 0.1 * h2)                         # LeakyReLU(0.1)
    h3 = jnp.dot(w3, h2.astype(jnp.bfloat16),
                 preferred_element_type=jnp.float32) + b3
    return jnp.maximum(h3, 0.0)                            # ReLU


def _single_shot_kernel(xT_ref, w1_ref, b1_ref, w2_ref, b2_ref, w3_ref, b3_ref,
                        o_ref):
    """Whole problem in one gridless invocation (small N_atoms fast path)."""
    h3 = _mlp_t(xT_ref[...], w1_ref[...], b1_ref[...], w2_ref[...], b2_ref[...],
                w3_ref[...], b3_ref[...])
    o_ref[...] = jnp.sum(h3, axis=1)[None, :]              # (1, num_labels)


def _tiled_kernel(xT_ref, w1_ref, b1_ref, w2_ref, b2_ref, w3_ref, b3_ref,
                  o_ref, *, tile_n, tiles_per_chunk, n_atoms, needs_mask):
    """One (F, tile_n) atom tile; accumulates the per-chunk sum into o_ref."""
    c = pl.program_id(0)          # chunk axis ("parallel": shardable on v7x)
    i = pl.program_id(1)          # tile-within-chunk axis (reduction)

    # Output block for chunk c is VMEM-resident across the reduction axis.
    @pl.when(i == 0)
    def _():
        o_ref[...] = jnp.zeros_like(o_ref)

    h3 = _mlp_t(xT_ref[...], w1_ref[...], b1_ref[...], w2_ref[...], b2_ref[...],
                w3_ref[...], b3_ref[...])                  # (num_labels, tile_n)

    if needs_mask:
        col0 = (c * tiles_per_chunk + i) * tile_n

        @pl.when(col0 + tile_n <= n_atoms)                 # steady state: free
        def _():
            o_ref[...] += jnp.sum(h3, axis=1)[None, None, :]

        @pl.when(col0 + tile_n > n_atoms)                  # boundary tile only
        def _():
            cols = col0 + jax.lax.broadcasted_iota(jnp.int32, h3.shape, 1)
            o_ref[...] += jnp.sum(jnp.where(cols < n_atoms, h3, 0.0),
                                  axis=1)[None, None, :]
    else:
        o_ref[...] += jnp.sum(h3, axis=1)[None, None, :]


def _default_num_chunks():
    """2 partial-sum chunks only on v7x (2 TensorCores/chip), else 1."""
    try:
        kind = jax.devices()[0].device_kind.lower()
    except Exception:
        return 1
    return 2 if ("v7" in kind or "tpu7" in kind) else 1


def _round_up(x, m):
    return (x + m - 1) // m * m


@functools.partial(jax.jit, static_argnames=("tile_n", "num_chunks"))
def atom_red_block(x, w1, b1, w2, b2, w3, b3, *, tile_n=4096, num_chunks=None):
    """Forward pass of AtomRedBlock (eval mode).

    Args:
      x:  (N_atoms, num_features) float32 (PyTorch layout).
      w1: (32, num_features)   b1: (32,)       -- nn.Linear native (out, in).
      w2: (64, 32)             b2: (64,)
      w3: (num_labels, 64)     b3: (num_labels,)
      tile_n:     target atom-tile width (lane axis); also the single-shot
                  cutoff (N_atoms <= tile_n runs gridless).
      num_chunks: partial-sum chunks along the atom axis; None = auto
                  (2 on v7x to use both TensorCores, 1 on v5e/v6e).
    Returns:
      (num_labels,) float32 vector (ReLU'd outputs summed over atoms).
    """
    n_atoms, num_features = x.shape
    num_labels = w3.shape[0]

    # Feature-major ("atoms on lanes") operands, bf16 matmul inputs.
    # NOTE: callers that store x feature-major / bf16 upstream skip this copy.
    xT = x.T.astype(jnp.bfloat16)                          # (F, N)
    w1 = w1.astype(jnp.bfloat16)
    w2 = w2.astype(jnp.bfloat16)
    w3 = w3.astype(jnp.bfloat16)
    b1 = b1.astype(jnp.float32).reshape(-1, 1)
    b2 = b2.astype(jnp.float32).reshape(-1, 1)
    b3 = b3.astype(jnp.float32).reshape(-1, 1)

    if num_chunks is None:
        num_chunks = _default_num_chunks()

    if n_atoms <= tile_n:
        # Small problem: a 1-step pipeline would be pure prologue/epilogue, so
        # run gridless with all operands resident in VMEM.
        out = pl.pallas_call(
            _single_shot_kernel,
            out_shape=jax.ShapeDtypeStruct((1, num_labels), jnp.float32),
        )(xT, w1, b1, w2, b2, w3, b3)
        return out[0]

    # ---- Tiled path: grid = (num_chunks, tiles_per_chunk). ----
    # Re-derive the tile width so real tiles split evenly across chunks and
    # padding is confined to (at most) the globally-last tile.
    tiles_per_chunk = max(1, -(-n_atoms // (num_chunks * tile_n)))
    tile_w = _round_up(-(-n_atoms // (num_chunks * tiles_per_chunk)), 128)
    padded_cols = num_chunks * tiles_per_chunk * tile_w
    pad = padded_cols - n_atoms
    if pad > 0:
        # Tail-only padding (< one tile); XLA fuses it with the transpose/cast.
        xT = jnp.pad(xT, ((0, 0), (0, pad)))

    kernel = functools.partial(
        _tiled_kernel,
        tile_n=tile_w,
        tiles_per_chunk=tiles_per_chunk,
        n_atoms=n_atoms,
        needs_mask=pad > 0,
    )

    resident = lambda c, i: (0, 0)   # weights/biases stay in VMEM for all steps

    out = pl.pallas_call(
        kernel,
        out_shape=jax.ShapeDtypeStruct((num_chunks, 1, num_labels), jnp.float32),
        grid_spec=pltpu.PrefetchScalarGridSpec(
            num_scalar_prefetch=0,
            grid=(num_chunks, tiles_per_chunk),
            in_specs=[
                pl.BlockSpec((num_features, tile_w),
                             lambda c, i: (0, c * tiles_per_chunk + i)),  # x tile
                pl.BlockSpec(w1.shape, resident),
                pl.BlockSpec(b1.shape, resident),
                pl.BlockSpec(w2.shape, resident),
                pl.BlockSpec(b2.shape, resident),
                pl.BlockSpec(w3.shape, resident),
                pl.BlockSpec(b3.shape, resident),
            ],
            out_specs=pl.BlockSpec((1, 1, num_labels), lambda c, i: (c, 0, 0)),
        ),
        compiler_params=pltpu.CompilerParams(
            # chunk axis is parallel (v7x 2-core split), tile axis is a reduction
            dimension_semantics=("parallel", "arbitrary"),
        ),
    )(xT, w1, b1, w2, b2, w3, b3)

    # Combine the per-chunk partial sums.
    return jnp.sum(out[:, 0, :], axis=0)


if __name__ == "__main__":
    num_features = 16
    num_labels = 8
    num_hiddens = 32

    key = jax.random.PRNGKey(0)
    kx, k1, k2, k3, k4, k5, k6, kx2 = jax.random.split(key, 8)

    # PyTorch nn.Linear-style parameters in their native (out, in) layout.
    def lin_init(kw, kb, fan_in, fan_out):
        bound = 1.0 / jnp.sqrt(fan_in)
        w = jax.random.uniform(kw, (fan_out, fan_in), jnp.float32, -bound, bound)
        b = jax.random.uniform(kb, (fan_out,), jnp.float32, -bound, bound)
        return w, b

    w1, b1 = lin_init(k1, k2, num_features, num_hiddens)
    w2, b2 = lin_init(k3, k4, num_hiddens, num_hiddens * 2)
    w3, b3 = lin_init(k5, k6, num_hiddens * 2, num_labels)

    def ref_bf16(x):
        """Reference mirroring the kernel's bf16-matmul / f32-accumulate numerics."""
        bf = jnp.bfloat16
        leaky = lambda v: jnp.maximum(v, 0.1 * v)
        h1 = leaky(jnp.dot(x.astype(bf), w1.T.astype(bf),
                           preferred_element_type=jnp.float32) + b1)
        h2 = leaky(jnp.dot(h1.astype(bf), w2.T.astype(bf),
                           preferred_element_type=jnp.float32) + b2)
        h3 = jnp.maximum(jnp.dot(h2.astype(bf), w3.T.astype(bf),
                                 preferred_element_type=jnp.float32) + b3, 0.0)
        return jnp.sum(h3, axis=0)

    def ref_f32(x):
        """Full-precision reference (mirrors PyTorch eval-mode forward)."""
        leaky = lambda v: jnp.maximum(v, 0.1 * v)
        h1 = leaky(x @ w1.T + b1)
        h2 = leaky(h1 @ w2.T + b2)
        return jnp.sum(jnp.maximum(h2 @ w3.T + b3, 0.0), axis=0)

    # Small case: exercises the gridless single-shot path.
    x_small = jax.random.normal(kx, (32, num_features), jnp.float32)
    out_small = jax.block_until_ready(
        atom_red_block(x_small, w1, b1, w2, b2, w3, b3))
    assert out_small.shape == (num_labels,)
    assert jnp.allclose(out_small, ref_bf16(x_small), rtol=1e-2, atol=5e-2), (
        out_small, ref_bf16(x_small))
    assert jnp.allclose(out_small, ref_f32(x_small), rtol=3e-2, atol=3e-1), (
        out_small, ref_f32(x_small))

    # Larger, non-divisible case: exercises the tiled path (2 balanced chunks,
    # lane-dense atom tiles, boundary-tile-only masking).
    n_atoms = 3000
    x_big = jax.random.normal(kx2, (n_atoms, num_features), jnp.float32)
    out_big = jax.block_until_ready(
        atom_red_block(x_big, w1, b1, w2, b2, w3, b3, tile_n=1024, num_chunks=2))
    assert out_big.shape == (num_labels,)
    assert jnp.allclose(out_big, ref_bf16(x_big), rtol=1e-2, atol=5e-1), (
        out_big, ref_bf16(x_big))
    assert jnp.allclose(out_big, ref_f32(x_big), rtol=3e-2, atol=3.0), (
        out_big, ref_f32(x_big))

    print("KERNEL_OK")
</pallas_src>

<mosaic_0001>
module attributes {stable_mosaic.version = 11 : i64} {
  func.func @_single_shot_kernel(%arg0: memref<16x32xbf16, #tpu.memory_space<vmem>>, %arg1: memref<32x16xbf16, #tpu.memory_space<vmem>>, %arg2: memref<32x1xf32, #tpu.memory_space<vmem>>, %arg3: memref<64x32xbf16, #tpu.memory_space<vmem>>, %arg4: memref<64x1xf32, #tpu.memory_space<vmem>>, %arg5: memref<8x64xbf16, #tpu.memory_space<vmem>>, %arg6: memref<8x1xf32, #tpu.memory_space<vmem>>, %arg7: memref<1x8xf32, #tpu.memory_space<vmem>>) attributes {dimension_semantics = [], scalar_prefetch = 0 : i64, scratch_operands = 0 : i64, tpu.core_type = #tpu.core_type<tc>} {
    %c0 = arith.constant 0 : index
    %c0_0 = arith.constant 0 : index
    %0 = vector.load %arg0[%c0, %c0_0] : memref<16x32xbf16, #tpu.memory_space<vmem>>, vector<16x32xbf16>
    %c0_1 = arith.constant 0 : index
    %c0_2 = arith.constant 0 : index
    %1 = vector.load %arg1[%c0_1, %c0_2] : memref<32x16xbf16, #tpu.memory_space<vmem>>, vector<32x16xbf16>
    %c0_3 = arith.constant 0 : index
    %c0_4 = arith.constant 0 : index
    %2 = vector.load %arg2[%c0_3, %c0_4] : memref<32x1xf32, #tpu.memory_space<vmem>>, vector<32x1xf32>
    %c0_5 = arith.constant 0 : index
    %c0_6 = arith.constant 0 : index
    %3 = vector.load %arg3[%c0_5, %c0_6] : memref<64x32xbf16, #tpu.memory_space<vmem>>, vector<64x32xbf16>
    %c0_7 = arith.constant 0 : index
    %c0_8 = arith.constant 0 : index
    %4 = vector.load %arg4[%c0_7, %c0_8] : memref<64x1xf32, #tpu.memory_space<vmem>>, vector<64x1xf32>
    %c0_9 = arith.constant 0 : index
    %c0_10 = arith.constant 0 : index
    %5 = vector.load %arg5[%c0_9, %c0_10] : memref<8x64xbf16, #tpu.memory_space<vmem>>, vector<8x64xbf16>
    %c0_11 = arith.constant 0 : index
    %c0_12 = arith.constant 0 : index
    %6 = vector.load %arg6[%c0_11, %c0_12] : memref<8x1xf32, #tpu.memory_space<vmem>>, vector<8x1xf32>
    %cst = arith.constant dense<0.000000e+00> : vector<32x32xf32>
    %7 = tpu.matmul %1, %0, %cst {dimension_numbers = #tpu.dot_dimension_numbers<[1], [0], [0], [1], [0, 0, 1, 1], [], []>} : vector<32x16xbf16>, vector<16x32xbf16>, vector<32x32xf32> -> vector<32x32xf32>
    %8 = vector.broadcast %2 : vector<32x1xf32> to vector<32x32xf32>
    %9 = arith.addf %7, %8 : vector<32x32xf32>
    %cst_13 = arith.constant 1.000000e-01 : f32
    %10 = vector.broadcast %cst_13 : f32 to vector<32x32xf32>
    %11 = arith.mulf %10, %9 : vector<32x32xf32>
    %12 = arith.maximumf %9, %11 : vector<32x32xf32>
    %13 = arith.truncf %12 : vector<32x32xf32> to vector<32x32xbf16>
    %cst_14 = arith.constant dense<0.000000e+00> : vector<64x32xf32>
    %14 = tpu.matmul %3, %13, %cst_14 {dimension_numbers = #tpu.dot_dimension_numbers<[1], [0], [0], [1], [0, 0, 1, 1], [], []>} : vector<64x32xbf16>, vector<32x32xbf16>, vector<64x32xf32> -> vector<64x32xf32>
    %15 = vector.broadcast %4 : vector<64x1xf32> to vector<64x32xf32>
    %16 = arith.addf %14, %15 : vector<64x32xf32>
    %cst_15 = arith.constant 1.000000e-01 : f32
    %17 = vector.broadcast %cst_15 : f32 to vector<64x32xf32>
    %18 = arith.mulf %17, %16 : vector<64x32xf32>
    %19 = arith.maximumf %16, %18 : vector<64x32xf32>
    %20 = arith.truncf %19 : vector<64x32xf32> to vector<64x32xbf16>
    %cst_16 = arith.constant dense<0.000000e+00> : vector<8x32xf32>
    %21 = tpu.matmul %5, %20, %cst_16 {dimension_numbers = #tpu.dot_dimension_numbers<[1], [0], [0], [1], [0, 0, 1, 1], [], []>} : vector<8x64xbf16>, vector<64x32xbf16>, vector<8x32xf32> -> vector<8x32xf32>
    %22 = vector.broadcast %6 : vector<8x1xf32> to vector<8x32xf32>
    %23 = arith.addf %21, %22 : vector<8x32xf32>
    %cst_17 = arith.constant 0.000000e+00 : f32
    %24 = vector.broadcast %cst_17 : f32 to vector<8x32xf32>
    %25 = arith.maximumf %23, %24 : vector<8x32xf32>
    %cst_18 = arith.constant dense<0.000000e+00> : vector<8xf32>
    %26 = vector.multi_reduction <add>, %25, %cst_18 [1] : vector<8x32xf32> to vector<8xf32>
    %27 = vector.shape_cast %26 : vector<8xf32> to vector<1x8xf32>
    %c0_19 = arith.constant 0 : index
    %c0_20 = arith.constant 0 : index
    %28 = vector.load %arg7[%c0_19, %c0_20] : memref<1x8xf32, #tpu.memory_space<vmem>>, vector<1x8xf32>
    tpu.vector_store %arg7[%c0_19, %c0_20], %27 {strides = array<i32>} : memref<1x8xf32, #tpu.memory_space<vmem>>, vector<1x8xf32>,
    return
  }
}

</mosaic_0001>

<llo_original>
// kernel: atom_red_block.1
$region0: #{atom_red_block.1}
  #allocation0 [shape = 'u32[]', space=smem, size = 0x4, offset = 0x4, fixed_abs, tag = 'smem constant byte address 0x4 - core index']
  #allocation1 [shape = 'u32[144,128]{1,0:T(1,128)}', space=vmem, size = 0x12000, scoped, tag = 'internal scratch']
  %s0 = inlined_call_operand.vmem [shape: bf16[16,32], index: 0, kind: input, shape index: {}]
  %s1 = inlined_call_operand.vmem [shape: bf16[32,16], index: 1, kind: input, shape index: {}]
  %s2 = inlined_call_operand.vmem [shape: f32[32,1], index: 2, kind: input, shape index: {}]
  %s3 = inlined_call_operand.vmem [shape: bf16[64,32], index: 3, kind: input, shape index: {}]
  %s4 = inlined_call_operand.vmem [shape: f32[64,1], index: 4, kind: input, shape index: {}]
  %s5 = inlined_call_operand.vmem [shape: bf16[8,64], index: 5, kind: input, shape index: {}]
  %s6 = inlined_call_operand.vmem [shape: f32[8,1], index: 6, kind: input, shape index: {}]
  %s7 = inlined_call_operand.hbm [shape: f32[1,8], index: 7, kind: output, shape index: {}]
  %s8 = sld [smem:[#allocation0]]
  $region38: #{atom_red_block.1} parent=0
    _
  %s10 = ssub.s32 1, %s8
  %s11 = scalar_select 0, %s10, %s8
  $region1: #{atom_red_block.1} parent=0
    #allocation2 [shape = 'u8[512]{0}', space=vmem, size = 0x400, scoped, tag = 'output window, operand 0, single buffered']
    #allocation3 [shape = 's32[1]{0}', space=sflag, size = 0x4, scoped, tag = 'scoped memory for atom_red_block.1']
    %12 = vsyncpa [#allocation3], 0
    // Predicated region
    $region2: #{atom_red_block.1} parent=1 // pred_check
      _
    $region3: #{atom_red_block.1} parent=1 // pred_check_branch
      %14 = sbr.rel (0) target = $region5
    $region4: #{atom_red_block.1} parent=1 // pred_region
      _
    $region5: #{atom_red_block.1} parent=1 // pred_fallthru
      _
    // Predicated region
    $region6: #{atom_red_block.1} parent=1 // pred_check
      _
    $region7: #{atom_red_block.1} parent=1 // pred_check_branch
      %16 = sbr.rel (0) target = $region9
    $region8: #{atom_red_block.1} parent=1 // pred_region
      _
    $region9: #{atom_red_block.1} parent=1 // pred_fallthru
      _
    // Predicated region
    $region10: #{atom_red_block.1} parent=1 // pred_check
      _
    $region11: #{atom_red_block.1} parent=1 // pred_check_branch
      %18 = sbr.rel (0) target = $region13
    $region12: #{atom_red_block.1} parent=1 // pred_region
      _
    $region13: #{atom_red_block.1} parent=1 // pred_fallthru
      _
    // Predicated region
    $region14: #{atom_red_block.1} parent=1 // pred_check
      _
    $region15: #{atom_red_block.1} parent=1 // pred_check_branch
      %20 = sbr.rel (0) target = $region17
    $region16: #{atom_red_block.1} parent=1 // pred_region
      _
    $region17: #{atom_red_block.1} parent=1 // pred_fallthru
      _
    // Predicated region
    $region18: #{atom_red_block.1} parent=1 // pred_check
      _
    $region19: #{atom_red_block.1} parent=1 // pred_check_branch
      %22 = sbr.rel (0) target = $region21
    $region20: #{atom_red_block.1} parent=1 // pred_region
      _
    $region21: #{atom_red_block.1} parent=1 // pred_fallthru
      _
    // Predicated region
    $region22: #{atom_red_block.1} parent=1 // pred_check
      _
    $region23: #{atom_red_block.1} parent=1 // pred_check_branch
      %24 = sbr.rel (0) target = $region25
    $region24: #{atom_red_block.1} parent=1 // pred_region
      _
    $region25: #{atom_red_block.1} parent=1 // pred_fallthru
      _
    // Predicated region
    $region26: #{atom_red_block.1} parent=1 // pred_check
      _
    $region27: #{atom_red_block.1} parent=1 // pred_check_branch
      %26 = sbr.rel (0) target = $region29
    $region28: #{atom_red_block.1} parent=1 // pred_region
      _
    $region29: #{atom_red_block.1} parent=1 // pred_fallthru
      _
    %v28 = vld [vmem:[%s0] sm:$0xf]
    %v29 = vld [vmem:[%s0 + $0x4] sm:$0xf]
    %v30 = vld [vmem:[%s1] sm:$0xf]
    %v31 = vld [vmem:[%s1 + $0x4] sm:$0xf]
    %v32 = vld [vmem:[%s1 + $0x8] sm:$0xf]
    %v33 = vld [vmem:[%s1 + $0xc] sm:$0xf]
    %v34 = vld [vmem:[%s2] sm:$0xff]
    %v35 = vld [vmem:[%s2 + $0x8] sm:$0xff]
    %v36 = vld [vmem:[%s2 + $0x10] sm:$0xff]
    %v37 = vld [vmem:[%s2 + $0x18] sm:$0xff]
    %v38 = vld [vmem:[%s3] sm:$0xf]
    %v39 = vld [vmem:[%s3 + $0x4] sm:$0xf]
    %v40 = vld [vmem:[%s3 + $0x8] sm:$0xf]
    %v41 = vld [vmem:[%s3 + $0xc] sm:$0xf]
    %v42 = vld [vmem:[%s3 + $0x10] sm:$0xf]
    %v43 = vld [vmem:[%s3 + $0x14] sm:$0xf]
    %v44 = vld [vmem:[%s3 + $0x18] sm:$0xf]
    %v45 = vld [vmem:[%s3 + $0x1c] sm:$0xf]
    %v46 = vld [vmem:[%s4] sm:$0xff]
    %v47 = vld [vmem:[%s4 + $0x8] sm:$0xff]
    %v48 = vld [vmem:[%s4 + $0x10] sm:$0xff]
    %v49 = vld [vmem:[%s4 + $0x18] sm:$0xff]
    %v50 = vld [vmem:[%s4 + $0x20] sm:$0xff]
    %v51 = vld [vmem:[%s4 + $0x28] sm:$0xff]
    %v52 = vld [vmem:[%s4 + $0x30] sm:$0xff]
    %v53 = vld [vmem:[%s4 + $0x38] sm:$0xff]
    %v54 = vld [vmem:[%s5] sm:$0xf]
    %v55 = vld [vmem:[%s6] sm:$0xff]
    %57 = vset.pattern.permute.xlu0 0
    %58 = vperm.xlu0 %57, %v34
    %v59 = vpop.permute.xlu0 %58
    %62 = vset.pattern.permute.xlu0 0
    %63 = vperm.xlu0 %62, %v35
    %v64 = vpop.permute.xlu0 %63
    %67 = vset.pattern.permute.xlu0 0
    %68 = vperm.xlu0 %67, %v36
    %v69 = vpop.permute.xlu0 %68
    %72 = vset.pattern.permute.xlu0 0
    %73 = vperm.xlu0 %72, %v37
    %v74 = vpop.permute.xlu0 %73
    %v80 = vunpack.c.l.b16 %v30
    %v81 = vunpack.c.l.b16 %v31
    %v82 = vunpack.c.l.b16 %v32
    %v83 = vunpack.c.l.b16 %v33
    %v84 = vpack.c.b16 %v81, %v80
    %v85 = vpack.c.b16 %v83, %v82
    %v88 = vunpack.c.l.b16 %v28
    %v89 = vunpack.c.l.b16 %v29
    %v90 = vpack.c.b16 %v89, %v88
    %vm92 = vcmask 130048
    %v94 = vsel %vm92, %v84, 0
    %v97 = vsel %vm92, %v85, 0
    %99 = vmatprep.subr.bf16.mxu0 0
    %100 = vmatpush1.bf16.msra.mxu0 %v90
    %101 = vmatprep.subr.bf16.mxu0 0
    %102 = vmatpush1.bf16.msra.mxu0 0
    %103 = vmatprep.subr.bf16.mxu0 0
    %104 = vmatpush1.bf16.msra.mxu0 0
    %105 = vmatprep.subr.bf16.mxu0 0
    %106 = vmatpush1.bf16.msra.mxu0 0
    %107 = vmatprep.subr.bf16.mxu0 0
    %108 = vmatpush1.bf16.msra.mxu0 0
    %109 = vmatprep.subr.bf16.mxu0 0
    %110 = vmatpush1.bf16.msra.mxu0 0
    %111 = vmatprep.subr.bf16.mxu0 0
    %112 = vmatpush1.bf16.msra.mxu0 0
    %113 = vmatprep.subr.bf16.mxu0 0
    %114 = vmatpush1.bf16.msra.mxu0 0
    %115 = vmatprep.subr.bf16.mxu0 0
    %116 = vmatpush1.bf16.msra.mxu0 0
    %117 = vmatprep.subr.bf16.mxu0 0
    %118 = vmatpush1.bf16.msra.mxu0 0
    %119 = vmatprep.subr.bf16.mxu0 0
    %120 = vmatpush1.bf16.msra.mxu0 0
    %121 = vmatprep.subr.bf16.mxu0 0
    %122 = vmatpush1.bf16.msra.mxu0 0
    %123 = vmatprep.subr.bf16.mxu0 0
    %124 = vmatpush1.bf16.msra.mxu0 0
    %125 = vmatprep.subr.bf16.mxu0 0
    %126 = vmatpush1.bf16.msra.mxu0 0
    %127 = vmatprep.subr.bf16.mxu0 0
    %128 = vmatpush1.bf16.msra.mxu0 0
    %129 = vmatprep.subr.bf16.mxu0 0
    %130 = vmatpush1.bf16.msra.mxu0 0
    %131 = vmatprep.mubr.bf16.mxu0 0
    %132 = vmatmul.mubr.bf16.gmra.mrb[0].mxu0 %v94
    %v133 = vpop.f32.mrb[0].mxu0
    %v134 = vadd.f32 %v59, %v133
    %v135 = vpop.f32.mrb[0].mxu0
    %v136 = vpop.f32.mrb[0].mxu0
    %v137 = vadd.f32 %v64, %v136
    %v138 = vpop.f32.mrb[0].mxu0
    %139 = vmatprep.mubr.bf16.mxu0 0
    %140 = vmatmul.mubr.bf16.gmra.mrb[0].mxu0 %v97
    %v141 = vpop.f32.mrb[0].mxu0
    %v142 = vadd.f32 %v69, %v141
    %v143 = vpop.f32.mrb[0].mxu0
    %v144 = vpop.f32.mrb[0].mxu0
    %v145 = vadd.f32 %v74, %v144
    %v146 = vpop.f32.mrb[0].mxu0
    %147 = vdwg.mxu0
    %v148 = vmul.f32 %v134, 0.1
    %v149 = vmul.f32 %v137, 0.1
    %v150 = vmul.f32 %v142, 0.1
    %v151 = vmul.f32 %v145, 0.1
    %v152 = vmax.f32 %v134, %v148
    %v153 = vmax.f32 %v137, %v149
    %v154 = vmax.f32 %v142, %v150
    %v155 = vmax.f32 %v145, %v151
    %v156 = vpack.c.bf16 %v153, %v152
    %v157 = vpack.c.bf16 %v155, %v154
    %159 = vset.pattern.permute.xlu0 0
    %160 = vperm.xlu0 %159, %v46
    %v161 = vpop.permute.xlu0 %160
    %164 = vset.pattern.permute.xlu0 0
    %165 = vperm.xlu0 %164, %v47
    %v166 = vpop.permute.xlu0 %165
    %169 = vset.pattern.permute.xlu0 0
    %170 = vperm.xlu0 %169, %v48
    %v171 = vpop.permute.xlu0 %170
    %174 = vset.pattern.permute.xlu0 0
    %175 = vperm.xlu0 %174, %v49
    %v176 = vpop.permute.xlu0 %175
    %179 = vset.pattern.permute.xlu0 0
    %180 = vperm.xlu0 %179, %v50
    %v181 = vpop.permute.xlu0 %180
    %184 = vset.pattern.permute.xlu0 0
    %185 = vperm.xlu0 %184, %v51
    %v186 = vpop.permute.xlu0 %185
    %189 = vset.pattern.permute.xlu0 0
    %190 = vperm.xlu0 %189, %v52
    %v191 = vpop.permute.xlu0 %190
    %194 = vset.pattern.permute.xlu0 0
    %195 = vperm.xlu0 %194, %v53
    %v196 = vpop.permute.xlu0 %195
    %v206 = vunpack.c.l.b16 %v38
    %v207 = vunpack.c.l.b16 %v39
    %v208 = vunpack.c.l.b16 %v40
    %v209 = vunpack.c.l.b16 %v41
    %v210 = vunpack.c.l.b16 %v42
    %v211 = vunpack.c.l.b16 %v43
    %v212 = vunpack.c.l.b16 %v44
    %v213 = vunpack.c.l.b16 %v45
    %v214 = vpack.c.b16 %v207, %v206
    %v215 = vpack.c.b16 %v209, %v208
    %v216 = vpack.c.b16 %v211, %v210
    %v217 = vpack.c.b16 %v213, %v212
    %vm218 = vcmask 261120
    %v220 = vsel %vm218, %v214, 0
    %v223 = vsel %vm218, %v215, 0
    %v226 = vsel %vm218, %v216, 0
    %v229 = vsel %vm218, %v217, 0
    %231 = vmatprep.subr.bf16.mxu0 0
    %232 = vmatpush1.bf16.msra.mxu0 %v156
    %233 = vmatprep.subr.bf16.mxu0 0
    %234 = vmatpush1.bf16.msra.mxu0 %v157
    %235 = vmatprep.subr.bf16.mxu0 0
    %236 = vmatpush1.bf16.msra.mxu0 0
    %237 = vmatprep.subr.bf16.mxu0 0
    %238 = vmatpush1.bf16.msra.mxu0 0
    %239 = vmatprep.subr.bf16.mxu0 0
    %240 = vmatpush1.bf16.msra.mxu0 0
    %241 = vmatprep.subr.bf16.mxu0 0
    %242 = vmatpush1.bf16.msra.mxu0 0
    %243 = vmatprep.subr.bf16.mxu0 0
    %244 = vmatpush1.bf16.msra.mxu0 0
    %245 = vmatprep.subr.bf16.mxu0 0
    %246 = vmatpush1.bf16.msra.mxu0 0
    %247 = vmatprep.subr.bf16.mxu0 0
    %248 = vmatpush1.bf16.msra.mxu0 0
    %249 = vmatprep.subr.bf16.mxu0 0
    %250 = vmatpush1.bf16.msra.mxu0 0
    %251 = vmatprep.subr.bf16.mxu0 0
    %252 = vmatpush1.bf16.msra.mxu0 0
    %253 = vmatprep.subr.bf16.mxu0 0
    %254 = vmatpush1.bf16.msra.mxu0 0
    %255 = vmatprep.subr.bf16.mxu0 0
    %256 = vmatpush1.bf16.msra.mxu0 0
    %257 = vmatprep.subr.bf16.mxu0 0
    %258 = vmatpush1.bf16.msra.mxu0 0
    %259 = vmatprep.subr.bf16.mxu0 0
    %260 = vmatpush1.bf16.msra.mxu0 0
    %261 = vmatprep.subr.bf16.mxu0 0
    %262 = vmatpush1.bf16.msra.mxu0 0
    %263 = vmatprep.mubr.bf16.mxu0 0
    %264 = vmatmul.mubr.bf16.gmra.mrb[0].mxu0 %v220
    %v265 = vpop.f32.mrb[0].mxu0
    %v266 = vadd.f32 %v161, %v265
    %v267 = vpop.f32.mrb[0].mxu0
    %v268 = vpop.f32.mrb[0].mxu0
    %v269 = vadd.f32 %v166, %v268
    %v270 = vpop.f32.mrb[0].mxu0
    %271 = vmatprep.mubr.bf16.mxu0 0
    %272 = vmatmul.mubr.bf16.gmra.mrb[0].mxu0 %v223
    %v273 = vpop.f32.mrb[0].mxu0
    %v274 = vadd.f32 %v171, %v273
    %v275 = vpop.f32.mrb[0].mxu0
    %v276 = vpop.f32.mrb[0].mxu0
    %v277 = vadd.f32 %v176, %v276
    %v278 = vpop.f32.mrb[0].mxu0
    %279 = vmatprep.mubr.bf16.mxu0 0
    %280 = vmatmul.mubr.bf16.gmra.mrb[0].mxu0 %v226
    %v281 = vpop.f32.mrb[0].mxu0
    %v282 = vadd.f32 %v181, %v281
    %v283 = vpop.f32.mrb[0].mxu0
    %v284 = vpop.f32.mrb[0].mxu0
    %v285 = vadd.f32 %v186, %v284
    %v286 = vpop.f32.mrb[0].mxu0
    %287 = vmatprep.mubr.bf16.mxu0 0
    %288 = vmatmul.mubr.bf16.gmra.mrb[0].mxu0 %v229
    %v289 = vpop.f32.mrb[0].mxu0
    %v290 = vadd.f32 %v191, %v289
    %v291 = vpop.f32.mrb[0].mxu0
    %v292 = vpop.f32.mrb[0].mxu0
    %v293 = vadd.f32 %v196, %v292
    %v294 = vpop.f32.mrb[0].mxu0
    %295 = vdwg.mxu0
    %v296 = vmul.f32 %v266, 0.1
    %v297 = vmul.f32 %v269, 0.1
    %v298 = vmul.f32 %v274, 0.1
    %v299 = vmul.f32 %v277, 0.1
    %v300 = vmul.f32 %v282, 0.1
    %v301 = vmul.f32 %v285, 0.1
    %v302 = vmul.f32 %v290, 0.1
    %v303 = vmul.f32 %v293, 0.1
    %v304 = vmax.f32 %v266, %v296
    %v305 = vmax.f32 %v269, %v297
    %v306 = vmax.f32 %v274, %v298
    %v307 = vmax.f32 %v277, %v299
    %v308 = vmax.f32 %v282, %v300
    %v309 = vmax.f32 %v285, %v301
    %v310 = vmax.f32 %v290, %v302
    %v311 = vmax.f32 %v293, %v303
    %v312 = vpack.c.bf16 %v305, %v304
    %v313 = vpack.c.bf16 %v307, %v306
    %v314 = vpack.c.bf16 %v309, %v308
    %v315 = vpack.c.bf16 %v311, %v310
    %317 = vset.pattern.permute.xlu0 0
    %318 = vperm.xlu0 %317, %v55
    %v319 = vpop.permute.xlu0 %318
    %vm321 = vcmask 523264
    %v323 = vsel %vm321, %v54, 0
    %325 = vmatprep.subr.bf16.mxu0 0
    %326 = vmatpush1.bf16.msra.mxu0 %v312
    %327 = vmatprep.subr.bf16.mxu0 0
    %328 = vmatpush1.bf16.msra.mxu0 %v313
    %329 = vmatprep.subr.bf16.mxu0 0
    %330 = vmatpush1.bf16.msra.mxu0 %v314
    %331 = vmatprep.subr.bf16.mxu0 0
    %332 = vmatpush1.bf16.msra.mxu0 %v315
    %333 = vmatprep.subr.bf16.mxu0 0
    %334 = vmatpush1.bf16.msra.mxu0 0
    %335 = vmatprep.subr.bf16.mxu0 0
    %336 = vmatpush1.bf16.msra.mxu0 0
    %337 = vmatprep.subr.bf16.mxu0 0
    %338 = vmatpush1.bf16.msra.mxu0 0
    %339 = vmatprep.subr.bf16.mxu0 0
    %340 = vmatpush1.bf16.msra.mxu0 0
    %341 = vmatprep.subr.bf16.mxu0 0
    %342 = vmatpush1.bf16.msra.mxu0 0
    %343 = vmatprep.subr.bf16.mxu0 0
    %344 = vmatpush1.bf16.msra.mxu0 0
    %345 = vmatprep.subr.bf16.mxu0 0
    %346 = vmatpush1.bf16.msra.mxu0 0
    %347 = vmatprep.subr.bf16.mxu0 0
    %348 = vmatpush1.bf16.msra.mxu0 0
    %349 = vmatprep.subr.bf16.mxu0 0
    %350 = vmatpush1.bf16.msra.mxu0 0
    %351 = vmatprep.subr.bf16.mxu0 0
    %352 = vmatpush1.bf16.msra.mxu0 0
    %353 = vmatprep.subr.bf16.mxu0 0
    %354 = vmatpush1.bf16.msra.mxu0 0
    %355 = vmatprep.subr.bf16.mxu0 0
    %356 = vmatpush1.bf16.msra.mxu0 0
    %357 = vmatprep.mubr.bf16.mxu0 0
    %358 = vmatmul.mubr.bf16.gmra.mrb[0].mxu0 %v323
    %v359 = vpop.f32.mrb[0].mxu0
    %v360 = vadd.f32 %v319, %v359
    %v361 = vpop.f32.mrb[0].mxu0
    %v362 = vpop.f32.mrb[0].mxu0
    %v363 = vpop.f32.mrb[0].mxu0
    %364 = vdwg.mxu0
    %v365 = vmax.f32 %v360, 0.0
    %v366 = vsel %vm218, %v365, 0.0
    %367 = vadd.xlane.f32.xlu0 %v366
    %v368 = vpop.xlane.xlu0 %367
    %v370 = vlaneseq
    %v371 = vand.u32 %v370, 127
    %v372 = vlaneseq
    %v373 = vshrl.u32 %v372, 7
    %v374 = vsub.s32 %v371, %v373
    %v375 = vrot.slane %v368, %v374
    %vm377 = vcmask 57344
    %378 = vst.msk [vmem:[#allocation2] sm:$0x1] %vm377, %v375
    // Predicated region
    $region30: #{atom_red_block.1} parent=1 // pred_check
      _
    $region31: #{atom_red_block.1} parent=1 // pred_check_branch
      %380 = sbr.rel (0) target = $region33
    $region32: #{atom_red_block.1} parent=1 // pred_region
      %s382 = ssub.s32 16, 16
      %383 = vsyncadd [#allocation3], %s382
      %s385 = sshll.u32 [#allocation2], 4
      %s386 = int_to_ptr.vmem [resolvable:$true] %s385
      %388 = dma.vmem_to_hbm [thread:$0]  %s386, 16, %s7, [#allocation3]
    $region33: #{atom_red_block.1} parent=1 // pred_fallthru
      _
    // Predicated region
    $region34: #{atom_red_block.1} parent=1 // pred_check
      _
    $region35: #{atom_red_block.1} parent=1 // pred_check_branch
      %390 = sbr.rel (0) target = $region37
    $region36: #{atom_red_block.1} parent=1 // pred_region
      %391 = dma.done [#allocation3], 16
    $region37: #{atom_red_block.1} parent=1 // pred_fallthru
      _
    %392 = vsyncpa [#allocation3], 1

</llo_original>
